<compile_context>
chip_gen: v7x
topology: tpu7x:2x2x1
jax: 0.10.0
libtpu: 0.0.40
codegen_flags: <defaults>
</compile_context>

<pallas_src>
from typing import NamedTuple

import jax
import jax.numpy as jnp
from jax.experimental import pallas as pl
from jax.experimental.pallas import tpu as pltpu


def _round_up(x, m):
    return ((x + m - 1) // m) * m


def _cdiv(a, b):
    return -(-a // b)


# ---------------------------------------------------------------------------
# Pallas kernel: one (column-tile j, K-step k) grid point.
# The output tile doubles as the f32 accumulator (resident across k).
# ---------------------------------------------------------------------------
def _pinv_matmul_kernel(y_ref, w_ref, o_ref):
    # y_ref: (nk, B_pad, tile_k)  resident measurement batch (bf16)
    # w_ref: (tile_k, tile_p)     one contiguous block of pinv(A)^T (bf16)
    # o_ref: (B_pad, tile_p)      f32 output tile == accumulator
    k = pl.program_id(1)

    @pl.when(k == 0)
    def _():
        o_ref[...] = jnp.zeros_like(o_ref)

    o_ref[...] += jnp.dot(
        y_ref[k], w_ref[...], preferred_element_type=jnp.float32
    )


# ---------------------------------------------------------------------------
# One-time parameter packing (hoisted out of the forward hot path).
# ---------------------------------------------------------------------------
class InvNetParams(NamedTuple):
    w_blocks: jax.Array   # (nj, M_pad, tile_p) block-major pinv(A)^T, bf16
    n: int                # image side length
    m: int                # number of measurements
    p: int                # n * n
    m_pad: int
    p_pad: int
    tile_k: int
    tile_p: int
    nj: int
    nk: int
    b_sub: int            # batch sublane rounding
    stream_dtype: object


def _choose_tiles(M, P, tile_p_default, tile_k_default):
    # Column (lane) tiling: lane-dense, and >= 2 "parallel" j tiles whenever
    # possible so both v7x TensorCores stream weights.
    P128 = _round_up(P, 128)
    n_lane_blocks = P128 // 128
    tpb_default = max(1, tile_p_default // 128)
    nj = _cdiv(n_lane_blocks, tpb_default)
    if n_lane_blocks >= 2:
        nj = max(nj, 2)
    tile_p = _cdiv(n_lane_blocks, nj) * 128
    P_pad = nj * tile_p

    # Reduction (K) tiling.  Defaults keep the W double buffer at
    # 2 * tile_k * tile_p * 2B = 8 MiB, well under v7x's 64 MiB VMEM / TC.
    M128 = _round_up(M, 128)
    tile_k = min(_round_up(tile_k_default, 128), M128)
    M_pad = _round_up(M128, tile_k)
    nk = M_pad // tile_k
    return tile_p, tile_k, P_pad, M_pad, nj, nk


def pack_invnet_params(a_pinv_t, n, *, tile_p=2048, tile_k=1024,
                       stream_dtype=jnp.bfloat16):
    """Pad + cast + block-major pack pinv(A)^T once, at init time."""
    M, P = a_pinv_t.shape
    assert P == n * n
    tile_p, tile_k, P_pad, M_pad, nj, nk = _choose_tiles(M, P, tile_p, tile_k)

    w = jnp.zeros((M_pad, P_pad), stream_dtype).at[:M, :P].set(
        a_pinv_t.astype(stream_dtype))
    # Block-major: w_blocks[j] is the contiguous (M_pad, tile_p) column slab,
    # so every (tile_k, tile_p) kernel tile is one contiguous HBM region.
    w_blocks = w.reshape(M_pad, nj, tile_p).transpose(1, 0, 2)

    b_sub = 16 if stream_dtype == jnp.bfloat16 else 8
    return InvNetParams(w_blocks, n, M, P, M_pad, P_pad, tile_k, tile_p,
                        nj, nk, b_sub, stream_dtype)


# ---------------------------------------------------------------------------
# Forward pass: x_ = reshape(y @ pinv(A)^T, (B, 1, n, n))
# ---------------------------------------------------------------------------
def invnet_forward(y, params: InvNetParams):
    B, M = y.shape
    assert M == params.m

    B_pad = _round_up(max(B, params.b_sub), params.b_sub)
    tile_k, tile_p = params.tile_k, params.tile_p
    nj, nk = params.nj, params.nk

    # y is tiny (tens-hundreds of KiB): pad, cast, and split into K blocks so
    # the whole measurement batch stays resident in VMEM for the entire grid.
    y_pad = jnp.zeros((B_pad, params.m_pad), params.stream_dtype).at[:B, :M].set(
        y.astype(params.stream_dtype))
    y_blk = y_pad.reshape(B_pad, nk, tile_k).transpose(1, 0, 2)  # (nk,B_pad,tk)

    itemsize = jnp.dtype(params.stream_dtype).itemsize
    needed = (2 * nk * B_pad * tile_k * itemsize      # resident y (conservative)
              + 2 * tile_k * tile_p * itemsize        # W double buffer
              + 2 * B_pad * tile_p * 4)               # f32 output double buffer
    vmem_bytes = int(min(48 << 20, max(8 << 20, int(1.5 * needed))))

    flops = 2 * B_pad * params.m_pad * params.p_pad
    bytes_accessed = (params.m_pad * params.p_pad * itemsize   # weights
                      + B_pad * params.m_pad * itemsize        # y
                      + B_pad * params.p_pad * 4)              # output

    out_flat = pl.pallas_call(
        _pinv_matmul_kernel,
        out_shape=jax.ShapeDtypeStruct((B_pad, params.p_pad), jnp.float32),
        grid_spec=pltpu.PrefetchScalarGridSpec(
            num_scalar_prefetch=0,
            grid=(nj, nk),                            # reduction axis last
            in_specs=[
                # Full y block, constant index -> DMAed once, stays resident.
                pl.BlockSpec((nk, B_pad, tile_k), lambda j, k: (0, 0, 0)),
                # Contiguous weight tile from the block-major slab j.
                pl.BlockSpec((None, tile_k, tile_p), lambda j, k: (j, k, 0)),
            ],
            out_specs=pl.BlockSpec((B_pad, tile_p), lambda j, k: (0, j)),
        ),
        compiler_params=pltpu.CompilerParams(
            dimension_semantics=("parallel", "arbitrary"),
            vmem_limit_bytes=vmem_bytes,
        ),
        cost_estimate=pl.CostEstimate(
            flops=flops, transcendentals=0, bytes_accessed=bytes_accessed),
    )(y_blk, params.w_blocks)

    # TODO(synk): this slice re-reads the padded buffer; in a production
    # pipeline fuse it into the consumer (or return the padded view).
    return out_flat[:B, :params.p].reshape(B, 1, params.n, params.n)


# ---------------------------------------------------------------------------
# Parameter / data setup (glue, plain JAX) and self-checks
# ---------------------------------------------------------------------------
def make_measurement_matrix(key, m, p):
    """Deterministic synthetic measurement operator A of shape (m, p)."""
    return jax.random.normal(key, (m, p), dtype=jnp.float32) / jnp.sqrt(p)


def _check(x_rec, y, w, B, N, tol):
    # Reference with identical bf16 input/weight quantization, f32 accumulate.
    x_ref = jnp.dot(
        y.astype(jnp.bfloat16), w.astype(jnp.bfloat16),
        preferred_element_type=jnp.float32,
    ).reshape(B, 1, N, N)
    err = float(jnp.max(jnp.abs(x_rec - x_ref)))
    assert err < tol, f"max abs err {err}"


def _run_pinv_case(key, B, N, M, tol=1e-3):
    k_a, k_x, k_n = jax.random.split(key, 3)
    P = N * N
    A = make_measurement_matrix(k_a, M, P)                 # (M, P)
    A_pinv_t = jnp.linalg.pinv(A).T.astype(jnp.float32)    # pinv(A)^T, (M, P)

    x_true = jax.random.normal(k_x, (B, 1, N, N), dtype=jnp.float32)
    y = x_true.reshape(B, P) @ A.T                         # (B, M)
    y = y + 0.01 * jax.random.normal(k_n, y.shape, dtype=jnp.float32)

    params = pack_invnet_params(A_pinv_t, N)               # packed once
    x_rec = invnet_forward(y, params)
    jax.block_until_ready(x_rec)
    assert x_rec.shape == (B, 1, N, N)
    _check(x_rec, y, A_pinv_t, B, N, tol)


def _run_big_case(key, B, N, M, tol=2e-3):
    # Larger shapes exercising K-tiling (nk > 1) and >= 2 parallel j tiles.
    # A random stand-in for pinv(A)^T avoids a large SVD in the test.
    k_w, k_y = jax.random.split(key)
    P = N * N
    W = jax.random.normal(k_w, (M, P), dtype=jnp.float32) / jnp.sqrt(M)
    y = jax.random.normal(k_y, (B, M), dtype=jnp.float32)

    params = pack_invnet_params(W, N)
    x_rec = invnet_forward(y, params)
    jax.block_until_ready(x_rec)
    assert x_rec.shape == (B, 1, N, N)
    _check(x_rec, y, W, B, N, tol)


if __name__ == "__main__":
    # Aligned toy case (single K step, 2 parallel column tiles).
    _run_pinv_case(jax.random.PRNGKey(0), B=2, N=16, M=128)
    # Unaligned case exercising B / M / P padding (P=144, M=100 not % 128).
    _run_pinv_case(jax.random.PRNGKey(1), B=3, N=12, M=100)
    # Bigger case exercising nk=2 K-tiling and block-major weight streaming.
    _run_big_case(jax.random.PRNGKey(2), B=4, N=48, M=1536)
    print("KERNEL_OK")
</pallas_src>

<mosaic_0001>
module attributes {stable_mosaic.version = 11 : i64} {
  func.func @_pinv_matmul_kernel(%arg0: i32, %arg1: i32, %arg2: memref<1x16x128xbf16, #tpu.memory_space<vmem>>, %arg3: memref<1x128x128xbf16, #tpu.memory_space<vmem>>, %arg4: memref<16x128xf32, #tpu.memory_space<vmem>>) attributes {dimension_semantics = [#tpu.dimension_semantics<parallel>, #tpu.dimension_semantics<arbitrary>], iteration_bounds = array<i64: 2, 1>, scalar_prefetch = 0 : i64, scratch_operands = 0 : i64, tpu.core_type = #tpu.core_type<tc>, window_params = [{pipeline_mode = #tpu.pipeline_mode<synchronous>, transform_indices = @transform_0, window_bounds = array<i64: 1, 16, 128>}, {transform_indices = @transform_1, window_bounds = array<i64: 1, 128, 128>}, {transform_indices = @transform_2, window_bounds = array<i64: 16, 128>}]} {
    %c0_i32 = arith.constant 0 : i32
    %0 = arith.cmpi eq, %arg1, %c0_i32 : i32
    %1 = arith.extui %0 : i1 to i32
    %c0_i32_0 = arith.constant 0 : i32
    %2 = arith.cmpi ne, %1, %c0_i32_0 : i32
    scf.if %2 {
      %cst_9 = arith.constant 0.000000e+00 : f32
      %12 = vector.broadcast %cst_9 : f32 to vector<16x128xf32>
      %c0_10 = arith.constant 0 : index
      %c0_11 = arith.constant 0 : index
      %13 = vector.load %arg4[%c0_10, %c0_11] : memref<16x128xf32, #tpu.memory_space<vmem>>, vector<16x128xf32>
      tpu.vector_store %arg4[%c0_10, %c0_11], %12 {strides = array<i32>} : memref<16x128xf32, #tpu.memory_space<vmem>>, vector<16x128xf32>,
    } else {
    }
    %c0 = arith.constant 0 : index
    %c0_1 = arith.constant 0 : index
    %3 = vector.load %arg4[%c0, %c0_1] : memref<16x128xf32, #tpu.memory_space<vmem>>, vector<16x128xf32>
    %4 = arith.index_cast %arg1 : i32 to index
    %c0_2 = arith.constant 0 : index
    %c0_3 = arith.constant 0 : index
    %5 = vector.load %arg2[%4, %c0_2, %c0_3] : memref<1x16x128xbf16, #tpu.memory_space<vmem>>, vector<1x16x128xbf16>
    %6 = vector.shape_cast %5 : vector<1x16x128xbf16> to vector<16x128xbf16>
    %c0_4 = arith.constant 0 : index
    %c0_5 = arith.constant 0 : index
    %c0_6 = arith.constant 0 : index
    %7 = vector.load %arg3[%c0_4, %c0_5, %c0_6] : memref<1x128x128xbf16, #tpu.memory_space<vmem>>, vector<1x128x128xbf16>
    %8 = vector.shape_cast %7 : vector<1x128x128xbf16> to vector<128x128xbf16>
    %cst = arith.constant dense<0.000000e+00> : vector<16x128xf32>
    %9 = tpu.matmul %6, %8, %cst {dimension_numbers = #tpu.dot_dimension_numbers<[1], [0], [0], [1], [0, 0, 1, 1], [], []>} : vector<16x128xbf16>, vector<128x128xbf16>, vector<16x128xf32> -> vector<16x128xf32>
    %10 = arith.addf %3, %9 : vector<16x128xf32>
    %c0_7 = arith.constant 0 : index
    %c0_8 = arith.constant 0 : index
    %11 = vector.load %arg4[%c0_7, %c0_8] : memref<16x128xf32, #tpu.memory_space<vmem>>, vector<16x128xf32>
    tpu.vector_store %arg4[%c0_7, %c0_8], %10 {strides = array<i32>} : memref<16x128xf32, #tpu.memory_space<vmem>>, vector<16x128xf32>,
    return
  }
  func.func @transform_0(%arg0: i32, %arg1: i32) -> (i32, i32, i32) {
    %c0_i32 = arith.constant 0 : i32
    %c0_i32_0 = arith.constant 0 : i32
    %c0_i32_1 = arith.constant 0 : i32
    %c0_i32_2 = arith.constant 0 : i32
    return %c0_i32, %c0_i32_0, %c0_i32_1 : i32, i32, i32
  }
  func.func @transform_1(%arg0: i32, %arg1: i32) -> (i32, i32, i32) {
    %c0_i32 = arith.constant 0 : i32
    %c0_i32_0 = arith.constant 0 : i32
    return %arg0, %arg1, %c0_i32 : i32, i32, i32
  }
  func.func @transform_2(%arg0: i32, %arg1: i32) -> (i32, i32) {
    %c0_i32 = arith.constant 0 : i32
    %c0_i32_0 = arith.constant 0 : i32
    return %c0_i32, %arg0 : i32, i32
  }
}

</mosaic_0001>

<llo_original>
// kernel: tpu_custom_call.1
$region0: #{tpu_custom_call.1}
  #allocation0 [shape = 'u32[]', space=smem, size = 0x4, offset = 0x4, fixed_abs, tag = 'smem constant byte address 0x4 - core index']
  #allocation1 [shape = 'u32[144,128]{1,0:T(1,128)}', space=vmem, size = 0x12000, scoped, tag = 'internal scratch']
  %s0 = inlined_call_operand.hbm [shape: bf16[1,16,128], index: 0, kind: input, shape index: {}]
  %s1 = inlined_call_operand.hbm [shape: bf16[2,128,128], index: 1, kind: input, shape index: {}]
  %s2 = inlined_call_operand.hbm [shape: f32[16,256], index: 2, kind: output, shape index: {}]
  %s3 = sld [smem:[#allocation0]]
  $region53: #{tpu_custom_call.1} parent=0
    _
  %s5 = ssub.s32 1, %s3
  %s6 = scalar_select 0, %s5, %s3
  $region1: #{tpu_custom_call.1} parent=0
    #allocation2 [shape = 'u8[4096]{0}', space=vmem, size = 0x1000, scoped, tag = 'input window, operand 0, single buffered']
    #allocation3 [shape = 's32[2]{0}', space=sflag, size = 0x8, scoped, tag = 'scoped memory for tpu_custom_call.1']
    #allocation4 [shape = 's32[2]{0}', space=sflag, size = 0x8, scoped, tag = 'scoped memory for tpu_custom_call.1']
    #allocation5 [shape = 'u8[65536]{0}', space=vmem, size = 0x10000, scoped, tag = 'input window, operand 1']
    #allocation6 [shape = 's32[2]{0}', space=sflag, size = 0x8, scoped, tag = 'scoped memory for tpu_custom_call.1']
    #allocation7 [shape = 'u8[16384]{0}', space=vmem, size = 0x4000, scoped, tag = 'output window, operand 0']
    %7 = vsyncpa [#allocation3], 0
    %8 = vsyncpa [#allocation6], 0
    %s9 = scalar_lea.sflag [#allocation6], 1
    %10 = vsyncpa %s9, 0
    %11 = vsyncpa [#allocation4], 0
    %s12 = scalar_lea.sflag [#allocation4], 1
    %13 = vsyncpa %s12, 0
    loop: start=0, step=1, limit=4
    $region2: #{tpu_custom_call.1} parent=1 // loop_pre_header
      _
    $region3: #{tpu_custom_call.1} parent=1 // loop_header
      %s15 = sphi 0, %s19
      %p16 = scmp.ge.s32.totalorder %s15, 4
      %s22 = sphi 0, %s34
      %s23 = sphi 0, %s30
      %s24 = sphi 0, %s22
      %s25 = sphi 0, %s23
      %s26 = sphi 0, %s24
      %s27 = sphi 0, %s25
      %s35 = sphi 0, %s35
      %s37 = sphi 0, %s35
      %s38 = sphi 0, %s37
      %s52 = sphi 0, %s38
      %s60 = sphi 0, %s62
      %s63 = sphi 0, %s60
      %s64 = sphi 0, %s63
      %s80 = sphi 0, %s64
      %s86 = sphi 0, %s88
      %s89 = sphi 0, %s86
      %s90 = sphi 0, %s89
      %s106 = sphi 0, %s90
    $region4: #{tpu_custom_call.1} parent=1 // loop_header_branch
      %18 = sbr.rel (%p16) target = $region8
    $region5: #{tpu_custom_call.1} parent=1 // loop_body
      %s20 = ssub.s32 %s15, 1
      %s21 = ssub.s32 %s15, 2
      %s28 = sadd.s32 1, %s23
      %p29 = scmp.ge.s32.totalorder %s28, 1
      %s30 = scalar_select %p29, 0, %s28
      %s31 = sadd.s32 1, %s22
      %s32 = scalar_select %p29, %s31, %s22
      %p33 = scmp.ge.s32.totalorder %s32, 2
      %s34 = scalar_select %p33, 0, %s32
      %s36 = sadd.s32 %s35, 1
      %p39 = scmp.eq.s32.totalorder %s15, 1
      %p40 = scmp.ne.s32.totalorder %s35, %s37
      %p41 = scmp.eq.s32.totalorder %s15, 0
      %p42 = por %p40, %p41
      %p43 = scmp.ne.s32.totalorder %s35, %s37
      %p44 = scmp.eq.s32.totalorder %s20, 1
      %p45 = por %p43, %p44
      %p46 = scmp.ne.s32.totalorder %s37, %s38
      %p47 = scmp.eq.s32.totalorder %s20, 0
      %p48 = por %p46, %p47
      %p49 = scmp.ne.s32.totalorder %s37, %s38
      %p50 = scmp.eq.s32.totalorder %s21, 1
      %p51 = por %p49, %p50
      %p53 = scmp.ne.s32.totalorder %s38, %s52
      %p54 = scmp.eq.s32.totalorder %s21, 0
      %p55 = por %p53, %p54
      %s56 = ssub.s32 %s22, %s34
      %s57 = ssub.s32 %s23, %s30
      %s58 = sor.u32 %s56, %s57
      %p59 = scmp.eq.s32.totalorder %s58, 0
      %s61 = sadd.s32 %s60, 1
      %s62 = scalar_select %p59, %s60, %s61
      %p65 = pneg %p59
      %p66 = scmp.eq.s32.totalorder %s15, 1
      %p67 = por %p65, %p66
      %p68 = scmp.ne.s32.totalorder %s60, %s63
      %p69 = scmp.eq.s32.totalorder %s15, 0
      %p70 = por %p68, %p69
      %p71 = scmp.ne.s32.totalorder %s60, %s63
      %p72 = scmp.eq.s32.totalorder %s20, 1
      %p73 = por %p71, %p72
      %p74 = scmp.ne.s32.totalorder %s63, %s64
      %p75 = scmp.eq.s32.totalorder %s20, 0
      %p76 = por %p74, %p75
      %p77 = scmp.ne.s32.totalorder %s63, %s64
      %p78 = scmp.eq.s32.totalorder %s21, 1
      %p79 = por %p77, %p78
      %p81 = scmp.ne.s32.totalorder %s64, %s80
      %p82 = scmp.eq.s32.totalorder %s21, 0
      %p83 = por %p81, %p82
      %s84 = ssub.s32 %s22, %s34
      %p85 = scmp.eq.s32.totalorder %s84, 0
      %s87 = sadd.s32 %s86, 1
      %s88 = scalar_select %p85, %s86, %s87
      %p91 = pneg %p85
      %p92 = scmp.eq.s32.totalorder %s15, 1
      %p93 = por %p91, %p92
      %p94 = scmp.ne.s32.totalorder %s86, %s89
      %p95 = scmp.eq.s32.totalorder %s15, 0
      %p96 = por %p94, %p95
      %p97 = scmp.ne.s32.totalorder %s86, %s89
      %p98 = scmp.eq.s32.totalorder %s20, 1
      %p99 = por %p97, %p98
      %p100 = scmp.ne.s32.totalorder %s89, %s90
      %p101 = scmp.eq.s32.totalorder %s20, 0
      %p102 = por %p100, %p101
      %p103 = scmp.ne.s32.totalorder %s89, %s90
      %p104 = scmp.eq.s32.totalorder %s21, 1
      %p105 = por %p103, %p104
      %p107 = scmp.ne.s32.totalorder %s90, %s106
      %p108 = scmp.eq.s32.totalorder %s21, 0
      %p109 = por %p107, %p108
      %p110 = scmp.le.s32.totalorder 1, %s15
      %p111 = scmp.lt.s32.totalorder %s15, 3
      %p112 = pnand %p110, %p111
      %p113 = pneg %p112
      // Predicated region
      $region9: #{tpu_custom_call.1} parent=5 // pred_check
        _
      $region10: #{tpu_custom_call.1} parent=5 // pred_check_branch
        %115 = sbr.rel (%p112) target = $region12
      $region11: #{tpu_custom_call.1} parent=5 // pred_region
        %s116 = ssub.s32 %s15, 1
        // Predicated region
        $region13: #{tpu_custom_call.1} parent=11 // pred_check
          %p117 = pneg %p48
        $region14: #{tpu_custom_call.1} parent=11 // pred_check_branch
          %119 = sbr.rel (%p117) target = $region16
        $region15: #{tpu_custom_call.1} parent=11 // pred_region
          %s121 = ssub.s32 128, 128
          %122 = vsyncadd [#allocation3], %s121
          %s123 = sshll.u32 [#allocation2], 4
          %s124 = int_to_ptr.vmem [resolvable:$true] %s123
          %129 = dma.hbm_to_vmem [thread:$0]  %s0, 128, %s124, [#allocation3], 64, 64, 4
        $region16: #{tpu_custom_call.1} parent=11 // pred_fallthru
          _
      $region12: #{tpu_custom_call.1} parent=5 // pred_fallthru
        _
      %p130 = scmp.lt.s32.totalorder %s15, 2
      // Predicated region
      $region17: #{tpu_custom_call.1} parent=5 // pred_check
        %p131 = pneg %p130
      $region18: #{tpu_custom_call.1} parent=5 // pred_check_branch
        %133 = sbr.rel (%p131) target = $region20
      $region19: #{tpu_custom_call.1} parent=5 // pred_region
        // Predicated region
        $region21: #{tpu_custom_call.1} parent=19 // pred_check
          %p134 = pneg %p70
        $region22: #{tpu_custom_call.1} parent=19 // pred_check_branch
          %136 = sbr.rel (%p134) target = $region24
        $region23: #{tpu_custom_call.1} parent=19 // pred_region
          %s137 = sand.u32 %s60, 1
          %s138 = scalar_lea.sflag [#allocation6], %s137
          %s139 = sand.u32 %s60, 1
          %s140 = smul.addr %s139, 64
          %s141 = scalar_lea.vmem [#allocation5], %s140
          %s142 = smul.u32 16, %s23
          %s144 = ssub.s32 1024, 1024
          %145 = vsyncadd %s138, %s144
          %s146 = smul.addr %s22, 16
          %s147 = sadd.s32 %s142, %s146
          %s148 = smul.addr %s147, 64
          %s149 = scalar_lea.hbm %s1, %s148
          %s150 = sshll.u32 %s141, 4
          %s151 = int_to_ptr.vmem [resolvable:$true] %s150
          %156 = dma.hbm_to_vmem [thread:$0]  %s149, 1024, %s151, %s138, 64, 64, 4
        $region24: #{tpu_custom_call.1} parent=19 // pred_fallthru
          _
      $region20: #{tpu_custom_call.1} parent=5 // pred_fallthru
        _
      %p157 = scmp.le.s32.totalorder 1, %s15
      %p158 = scmp.lt.s32.totalorder %s15, 3
      %p159 = pnand %p157, %p158
      %p160 = pneg %p159
      // Predicated region
      $region25: #{tpu_custom_call.1} parent=5 // pred_check
        _
      $region26: #{tpu_custom_call.1} parent=5 // pred_check_branch
        %162 = sbr.rel (%p159) target = $region28
      $region27: #{tpu_custom_call.1} parent=5 // pred_region
        %s163 = ssub.s32 %s15, 1
        // Predicated region
        $region29: #{tpu_custom_call.1} parent=27 // pred_check
          %p164 = pneg %p48
        $region30: #{tpu_custom_call.1} parent=27 // pred_check_branch
          %166 = sbr.rel (%p164) target = $region32
        $region31: #{tpu_custom_call.1} parent=27 // pred_region
          %167 = dma.done [#allocation3], 128
        $region32: #{tpu_custom_call.1} parent=27 // pred_fallthru
          _
        %s168 = sand.u32 %s63, 1
        %s169 = scalar_lea.sflag [#allocation6], %s168
        %s170 = sand.u32 %s63, 1
        %s171 = smul.addr %s170, 64
        %s172 = scalar_lea.vmem [#allocation5], %s171
        // Predicated region
        $region33: #{tpu_custom_call.1} parent=27 // pred_check
          %p173 = pneg %p76
        $region34: #{tpu_custom_call.1} parent=27 // pred_check_branch
          %175 = sbr.rel (%p173) target = $region36
        $region35: #{tpu_custom_call.1} parent=27 // pred_region
          %176 = dma.done %s169, 1024
        $region36: #{tpu_custom_call.1} parent=27 // pred_fallthru
          _
        %p177 = pneg %p48
        %p178 = pneg %p45
        %s179 = sand.u32 %s63, 1
        %s180 = scalar_lea.sflag [#allocation6], %s179
        %s181 = sand.u32 %s63, 1
        %s182 = smul.addr %s181, 64
        %s183 = scalar_lea.vmem [#allocation5], %s182
        %p184 = pneg %p76
        %p185 = pneg %p73
        %p186 = pneg %p102
        %p187 = pneg %p99
        %s188 = sand.u32 %s89, 1
        %s189 = scalar_lea.sflag [#allocation4], %s188
        %s190 = sand.u32 %s89, 1
        %s191 = smul.addr %s190, 16
        %s192 = scalar_lea.vmem [#allocation7], %s191
        %s193 = smul.u32 16, %s25
        %p195 = scmp.eq.s32.totalorder %s25, 0
        // Predicated region
        $region37: #{tpu_custom_call.1} parent=27 // pred_check
          %p196 = pneg %p195
        $region38: #{tpu_custom_call.1} parent=27 // pred_check_branch
          %198 = sbr.rel (%p196) target = $region40
        $region39: #{tpu_custom_call.1} parent=27 // pred_region
          %199 = vst [vmem:[%s192] sm:$0xff] 0.0
          %200 = vst [vmem:[%s192 + $0x8] sm:$0xff] 0.0
        $region40: #{tpu_custom_call.1} parent=27 // pred_fallthru
          _
        %v201 = vld [vmem:[%s192] sm:$0xff]
        %v202 = vld [vmem:[%s192 + $0x8] sm:$0xff]
        %s203 = smul.u32 %s25, 2
        %s204 = smul.addr %s203, 4
        %s205 = scalar_lea.vmem [#allocation2], %s204
        %v206 = vld [vmem:[%s205] sm:$0xf]
        %v207 = vld [vmem:[%s205 + $0x4] sm:$0xf]
        %v208 = vld [vmem:[%s172] sm:$0xf]
        %v209 = vld [vmem:[%s172 + $0x4] sm:$0xf]
        %v210 = vld [vmem:[%s172 + $0x8] sm:$0xf]
        %v211 = vld [vmem:[%s172 + $0xc] sm:$0xf]
        %v212 = vld [vmem:[%s172 + $0x10] sm:$0xf]
        %v213 = vld [vmem:[%s172 + $0x14] sm:$0xf]
        %v214 = vld [vmem:[%s172 + $0x18] sm:$0xf]
        %v215 = vld [vmem:[%s172 + $0x1c] sm:$0xf]
        %v216 = vld [vmem:[%s172 + $0x20] sm:$0xf]
        %v217 = vld [vmem:[%s172 + $0x24] sm:$0xf]
        %v218 = vld [vmem:[%s172 + $0x28] sm:$0xf]
        %v219 = vld [vmem:[%s172 + $0x2c] sm:$0xf]
        %v220 = vld [vmem:[%s172 + $0x30] sm:$0xf]
        %v221 = vld [vmem:[%s172 + $0x34] sm:$0xf]
        %v222 = vld [vmem:[%s172 + $0x38] sm:$0xf]
        %v223 = vld [vmem:[%s172 + $0x3c] sm:$0xf]
        %v226 = vunpack.c.l.b16 %v206
        %v227 = vunpack.c.l.b16 %v207
        %v228 = vpack.c.b16 %v227, %v226
        %v246 = vunpack.c.l.b16 %v208
        %v247 = vunpack.c.l.b16 %v209
        %v248 = vunpack.c.l.b16 %v210
        %v249 = vunpack.c.l.b16 %v211
        %v250 = vunpack.c.l.b16 %v212
        %v251 = vunpack.c.l.b16 %v213
        %v252 = vunpack.c.l.b16 %v214
        %v253 = vunpack.c.l.b16 %v215
        %v254 = vunpack.c.l.b16 %v216
        %v255 = vunpack.c.l.b16 %v217
        %v256 = vunpack.c.l.b16 %v218
        %v257 = vunpack.c.l.b16 %v219
        %v258 = vunpack.c.l.b16 %v220
        %v259 = vunpack.c.l.b16 %v221
        %v260 = vunpack.c.l.b16 %v222
        %v261 = vunpack.c.l.b16 %v223
        %v262 = vpack.c.b16 %v247, %v246
        %v263 = vpack.c.b16 %v249, %v248
        %v264 = vpack.c.b16 %v251, %v250
        %v265 = vpack.c.b16 %v253, %v252
        %v266 = vpack.c.b16 %v255, %v254
        %v267 = vpack.c.b16 %v257, %v256
        %v268 = vpack.c.b16 %v259, %v258
        %v269 = vpack.c.b16 %v261, %v260
        %278 = vmatprep.subr.bf16.mxu0 0
        %279 = vmatpush1.bf16.msra.mxu0 %v262
        %280 = vmatprep.subr.bf16.mxu0 0
        %281 = vmatpush1.bf16.msra.mxu0 %v263
        %282 = vmatprep.subr.bf16.mxu0 0
        %283 = vmatpush1.bf16.msra.mxu0 %v264
        %284 = vmatprep.subr.bf16.mxu0 0
        %285 = vmatpush1.bf16.msra.mxu0 %v265
        %286 = vmatprep.subr.bf16.mxu0 0
        %287 = vmatpush1.bf16.msra.mxu0 %v266
        %288 = vmatprep.subr.bf16.mxu0 0
        %289 = vmatpush1.bf16.msra.mxu0 %v267
        %290 = vmatprep.subr.bf16.mxu0 0
        %291 = vmatpush1.bf16.msra.mxu0 %v268
        %292 = vmatprep.subr.bf16.mxu0 0
        %293 = vmatpush1.bf16.msra.mxu0 %v269
        %294 = vmatprep.subr.bf16.mxu0 0
        %295 = vmatpush1.bf16.msra.mxu0 0
        %296 = vmatprep.subr.bf16.mxu0 0
        %297 = vmatpush1.bf16.msra.mxu0 0
        %298 = vmatprep.subr.bf16.mxu0 0
        %299 = vmatpush1.bf16.msra.mxu0 0
        %300 = vmatprep.subr.bf16.mxu0 0
        %301 = vmatpush1.bf16.msra.mxu0 0
        %302 = vmatprep.subr.bf16.mxu0 0
        %303 = vmatpush1.bf16.msra.mxu0 0
        %304 = vmatprep.subr.bf16.mxu0 0
        %305 = vmatpush1.bf16.msra.mxu0 0
        %306 = vmatprep.subr.bf16.mxu0 0
        %307 = vmatpush1.bf16.msra.mxu0 0
        %308 = vmatprep.subr.bf16.mxu0 0
        %309 = vmatpush1.bf16.msra.mxu0 0
        %310 = vmatprep.mubr.bf16.mxu0 0
        %311 = vmatmul.mubr.bf16.gmra.mrb[0].mxu0 %v228
        %v312 = vpop.f32.mrb[0].mxu0
        %v313 = vadd.f32 0.0, %v312
        %v314 = vpop.f32.mrb[0].mxu0
        %v315 = vpop.f32.mrb[0].mxu0
        %v316 = vadd.f32 0.0, %v315
        %v317 = vpop.f32.mrb[0].mxu0
        %318 = vdwg.mxu0
        %v319 = vadd.f32 %v201, %v313
        %v320 = vadd.f32 %v202, %v316
        %321 = vst [vmem:[%s192] sm:$0xff] %v319
        %322 = vst [vmem:[%s192 + $0x8] sm:$0xff] %v320
        %s323 = sand.u32 %s89, 1
        %s324 = scalar_lea.sflag [#allocation4], %s323
        %s325 = sand.u32 %s89, 1
        %s326 = smul.addr %s325, 16
        %s327 = scalar_lea.vmem [#allocation7], %s326
        // Predicated region
        $region41: #{tpu_custom_call.1} parent=27 // pred_check
          %p328 = pneg %p99
        $region42: #{tpu_custom_call.1} parent=27 // pred_check_branch
          %330 = sbr.rel (%p328) target = $region44
        $region43: #{tpu_custom_call.1} parent=27 // pred_region
          %s332 = ssub.s32 256, 256
          %333 = vsyncadd %s324, %s332
          %s334 = smul.addr %s24, 128
          %s335 = scalar_lea.hbm %s2, %s334
          %s336 = sshll.u32 %s327, 4
          %s337 = int_to_ptr.vmem [resolvable:$true] %s336
          %342 = dma.vmem_to_hbm [thread:$0]  %s337, 256, %s335, %s324, 128, 256, 8
        $region44: #{tpu_custom_call.1} parent=27 // pred_fallthru
          _
      $region28: #{tpu_custom_call.1} parent=5 // pred_fallthru
        _
      %p343 = scmp.le.s32.totalorder 2, %s15
      // Predicated region
      $region45: #{tpu_custom_call.1} parent=5 // pred_check
        %p344 = pneg %p343
      $region46: #{tpu_custom_call.1} parent=5 // pred_check_branch
        %346 = sbr.rel (%p344) target = $region48
      $region47: #{tpu_custom_call.1} parent=5 // pred_region
        %s347 = ssub.s32 %s15, 2
        // Predicated region
        $region49: #{tpu_custom_call.1} parent=47 // pred_check
          %p348 = pneg %p105
        $region50: #{tpu_custom_call.1} parent=47 // pred_check_branch
          %350 = sbr.rel (%p348) target = $region52
        $region51: #{tpu_custom_call.1} parent=47 // pred_region
          %s351 = sand.u32 %s90, 1
          %s352 = scalar_lea.sflag [#allocation4], %s351
          %s353 = sand.u32 %s90, 1
          %s354 = smul.addr %s353, 16
          %s355 = scalar_lea.vmem [#allocation7], %s354
          %356 = dma.done %s352, 256
        $region52: #{tpu_custom_call.1} parent=47 // pred_fallthru
          _
      $region48: #{tpu_custom_call.1} parent=5 // pred_fallthru
        _
    $region6: #{tpu_custom_call.1} parent=1 // loop_footer
      %s19 = sadd.s32 1, %s15
    $region7: #{tpu_custom_call.1} parent=1 // loop_footer_branch
      %14 = sbr.rel target = $region3
    $region8: #{tpu_custom_call.1} parent=1 // loop_exit
      _
    %357 = vsyncpa [#allocation3], 1
    %s358 = scalar_lea.sflag [#allocation3], 1
    %359 = vsyncpa %s358, 1
    %360 = vsyncpa [#allocation6], 1
    %s361 = scalar_lea.sflag [#allocation6], 1
    %362 = vsyncpa %s361, 1
    %363 = vsyncpa [#allocation4], 1
    %s364 = scalar_lea.sflag [#allocation4], 1
    %365 = vsyncpa %s364, 1

</llo_original>
